<compile_context>
chip_gen: v5e
topology: v5e:2x2
jax: 0.10.0
libtpu: 0.0.40
codegen_flags: <defaults>
</compile_context>

<pallas_src>
import functools
import math

import jax
import jax.numpy as jnp
from jax import lax
from jax.experimental import pallas as pl
from jax.experimental.pallas import tpu as pltpu

NEG_SLOPE = 0.01  # torch.nn.LeakyReLU default negative_slope


# --------------------------------------------------------------------------- #
# Kernel body (one ResGatedGraphConv layer; optionally fused pool + classifier)
# --------------------------------------------------------------------------- #
def _conv_kernel(src_ref, tgt_ref,                       # scalar-prefetch (SMEM)
                 h_ref, ea_ref, wf_ref, bf_ref, we_ref, be_ref,
                 *rest, num_edges, fuse_head):
    if fuse_head:
        (pool_ref, wch_ref, hb_ref, out_ref,
         k_s, q_s, v_s, acc, elin) = rest
    else:
        (out_ref, k_s, q_s, v_s, acc, elin) = rest

    e_blk = pl.program_id(0)
    edge_tile = ea_ref.shape[0]
    H = acc.shape[1]

    # ---- once per layer: fused [K|Q|V|skip] projection (previous layer's BN is
    # already folded into wf/bf host-side); bf16 operands, f32 accumulation. ----
    @pl.when(e_blk == 0)
    def _init():
        p = jnp.dot(h_ref[...], wf_ref[...],
                    preferred_element_type=jnp.float32) + bf_ref[...]
        k_s[...] = p[:, 0 * H:1 * H]          # lin_key(x)   (gathered at target i)
        q_s[...] = p[:, 1 * H:2 * H]          # lin_query(x) (gathered at source j)
        v_s[...] = p[:, 2 * H:3 * H]          # lin_value(x) (gathered at source j)
        acc[...] = p[:, 3 * H:4 * H]          # lin_skip(x) + conv bias seeds the sum

    # ---- lin_edge(edge_attr) for this edge tile; edge_dim == 1 is a broadcast
    # multiply so no rank-1 MXU push is wasted. ----
    ea = ea_ref[...].astype(jnp.float32)
    if ea.shape[1] == 1:
        elin[...] = ea * we_ref[...] + be_ref[...]
    else:
        elin[...] = jnp.dot(ea, we_ref[...],
                            preferred_element_type=jnp.float32) + be_ref[...]

    # ---- index-based gather / gated message / scatter-add over this edge tile ----
    base = e_blk * edge_tile

    def edge_body(t, carry):
        eid = base + t
        s = src_ref[eid]                      # SMEM scalar reads (scalar prefetch)
        d = tgt_ref[eid]
        el = elin[pl.ds(t, 1), :]
        k_i = k_s[pl.ds(d, 1), :] + el
        q_j = q_s[pl.ds(s, 1), :] + el
        v_j = v_s[pl.ds(s, 1), :] + el
        msg = jax.nn.sigmoid(k_i + q_j) * v_j            # f32 (VPU/EUP)

        @pl.when(eid < num_edges)                        # mask zero-padded edges
        def _scatter():
            acc[pl.ds(d, 1), :] = acc[pl.ds(d, 1), :] + msg

        return carry

    lax.fori_loop(0, edge_tile, edge_body, 0, unroll=True)

    # ---- epilogue on the last edge tile ----
    @pl.when(e_blk == pl.num_programs(0) - 1)
    def _epilogue():
        hn = acc[...]
        hn = jnp.where(hn > 0, hn, NEG_SLOPE * hn)       # LeakyReLU
        if fuse_head:
            # global_mean_pool + cat(clinical) + Linear classify.  BatchNorm3 is
            # folded into wch / hb host-side; hb already holds clinical@Wc_c + bias.
            pooled = jnp.dot(pool_ref[...], hn,
                             preferred_element_type=jnp.float32)
            out_ref[...] = jnp.dot(pooled, wch_ref[...],
                                   preferred_element_type=jnp.float32) + hb_ref[...]
        else:
            out_ref[...] = hn.astype(out_ref.dtype)      # h stays bf16 between layers


# --------------------------------------------------------------------------- #
# One pallas_call per conv layer
# --------------------------------------------------------------------------- #
def _conv_layer_call(h, src_p, tgt_p, ea_p, layer, *, num_edges, edge_tile,
                     head=None):
    wf, bf, we, be = layer
    N, din = h.shape
    H4 = wf.shape[1]
    H = H4 // 4
    E_pad, edge_dim = ea_p.shape
    n_blocks = E_pad // edge_tile

    resident = lambda e, s, t: (0, 0)                     # same block every step
    in_specs = [
        pl.BlockSpec((N, din), resident),                 # node features (VMEM resident)
        pl.BlockSpec((edge_tile, edge_dim), lambda e, s, t: (e, 0)),  # edge_attr tile
        pl.BlockSpec((din, H4), resident),                # fused [K|Q|V|skip] weight
        pl.BlockSpec((1, H4), resident),                  # fused bias row
        pl.BlockSpec((edge_dim, H), resident),            # lin_edge weight
        pl.BlockSpec((1, H), resident),                   # lin_edge bias
    ]
    inputs = [h, ea_p, wf, bf, we, be]

    if head is None:
        out_shape = jax.ShapeDtypeStruct((N, H), jnp.bfloat16)
        fuse_head = False
    else:
        pool, wc_head, head_bias = head
        G, C = pool.shape[0], wc_head.shape[1]
        in_specs += [pl.BlockSpec((G, N), resident),
                     pl.BlockSpec((H, C), resident),
                     pl.BlockSpec((G, C), resident)]
        inputs += [pool, wc_head, head_bias]
        out_shape = jax.ShapeDtypeStruct((G, C), jnp.float32)
        fuse_head = True
    out_spec = pl.BlockSpec(out_shape.shape, resident)

    grid_spec = pltpu.PrefetchScalarGridSpec(
        num_scalar_prefetch=2,                            # src / tgt indices -> SMEM
        grid=(n_blocks,),
        in_specs=in_specs,
        out_specs=out_spec,
        scratch_shapes=[
            pltpu.VMEM((N, H), jnp.float32),              # K   (per-layer projection)
            pltpu.VMEM((N, H), jnp.float32),              # Q
            pltpu.VMEM((N, H), jnp.float32),              # V
            pltpu.VMEM((N, H), jnp.float32),              # scatter accumulator
            pltpu.VMEM((edge_tile, H), jnp.float32),      # lin_edge tile
        ],
    )

    flops = 2 * N * din * H4 + 2 * E_pad * edge_dim * H + 10 * E_pad * H
    if head is not None:
        G, C = head[0].shape[0], head[1].shape[1]
        flops += 2 * G * N * H + 2 * G * H * C
    bytes_accessed = int(sum(a.size * a.dtype.itemsize for a in inputs)
                         + src_p.size * 4 + tgt_p.size * 4
                         + math.prod(out_shape.shape)
                         * jnp.dtype(out_shape.dtype).itemsize)

    kernel = functools.partial(_conv_kernel, num_edges=num_edges,
                               fuse_head=fuse_head)
    return pl.pallas_call(
        kernel,
        out_shape=out_shape,
        grid_spec=grid_spec,
        compiler_params=pltpu.CompilerParams(
            # edge axis is a scatter reduction -> sequential ('arbitrary').
            dimension_semantics=("arbitrary",),
            # explicit scoped limit: raises v5e's 16 MiB default, stays < v7x's
            # 64 MiB physical VMEM.
            vmem_limit_bytes=48 * 1024 * 1024),
        cost_estimate=pl.CostEstimate(flops=int(flops),
                                      transcendentals=int(E_pad * H),
                                      bytes_accessed=bytes_accessed),
    )(src_p, tgt_p, *inputs)


# --------------------------------------------------------------------------- #
# Full module forward
# --------------------------------------------------------------------------- #
def clinical_gated_gcn(x, src, tgt, edge_attr, pool, clinical,
                       folded_layers, folded_head, *, edge_tile=8):
    wc_head, wc_clin, bc_eff = folded_head
    E = src.shape[0]
    G, C = clinical.shape[0], wc_head.shape[1]

    # Pad the edge list to a multiple of the edge tile (pad edges masked in-kernel).
    E_pad = edge_tile * ((E + edge_tile - 1) // edge_tile)
    pad = E_pad - E
    src_p = jnp.pad(src.astype(jnp.int32), (0, pad))
    tgt_p = jnp.pad(tgt.astype(jnp.int32), (0, pad))
    ea_p = jnp.pad(edge_attr, ((0, pad), (0, 0)))

    # Clinical branch of the classifier (+ folded BN3 shift), plain XLA; the
    # kernel's cost estimate lets XLA overlap this with the conv kernels.
    head_bias = clinical @ wc_clin + bc_eff               # (G, C)

    h = x.astype(jnp.bfloat16)                            # node features bf16 between layers
    for li, layer in enumerate(folded_layers):
        last = li == len(folded_layers) - 1
        head = (pool, wc_head, head_bias) if last else None
        h = _conv_layer_call(h, src_p, tgt_p, ea_p, layer,
                             num_edges=E, edge_tile=edge_tile, head=head)
    out = h                                               # (G, C) logits
    # torch `squeeze()/unsqueeze(0)` fix-up (no-op for G>1, C>1).
    if G == 1:
        out = out.reshape(1, C)
    return out


# --------------------------------------------------------------------------- #
# Parameters: raw (torch-like) init + host-side fusion / BN folding
# --------------------------------------------------------------------------- #
def init_params(key, in_channels, hidden, num_classes, num_clinical, edge_dim):
    dims = [in_channels, hidden, hidden]
    raw_layers = []
    for layer in range(3):
        din = dims[layer]
        key, *ks = jax.random.split(key, 15)
        ks = iter(ks)

        def rnd(shape, scale=0.1):
            return scale * jax.random.normal(next(ks), shape, dtype=jnp.float32)

        raw_layers.append(dict(
            Wk=rnd((din, hidden)), bk=rnd((1, hidden)),
            Wq=rnd((din, hidden)), bq=rnd((1, hidden)),
            Wv=rnd((din, hidden)), bv=rnd((1, hidden)),
            We=rnd((edge_dim, hidden)), be=rnd((1, hidden)),
            Ws=rnd((din, hidden)),                       # lin_skip (bias=False)
            b_out=rnd((1, hidden)),                      # ResGatedGraphConv.bias
            gamma=1.0 + rnd((1, hidden)), beta=rnd((1, hidden)),
            mean=rnd((1, hidden)), var=1.0 + jnp.abs(rnd((1, hidden))),
        ))
    key, k1, k2, k3 = jax.random.split(key, 4)
    Wc_h = 0.1 * jax.random.normal(k1, (hidden, num_classes), dtype=jnp.float32)
    Wc_c = 0.1 * jax.random.normal(k2, (num_clinical, num_classes), dtype=jnp.float32)
    bc = 0.1 * jax.random.normal(k3, (1, num_classes), dtype=jnp.float32)
    return raw_layers, (Wc_h, Wc_c, bc)


def fold_params(raw_layers, head, eps=1e-5):
    """Fuse [K|Q|V|skip] projections and fold BN affines forward (exact algebra)."""
    Wc_h, Wc_c, bc = head
    folded, prev_scale, prev_shift = [], None, None
    for p in raw_layers:
        Wf = jnp.concatenate([p["Wk"], p["Wq"], p["Wv"], p["Ws"]], axis=1)   # (din, 4H)
        bf = jnp.concatenate([p["bk"], p["bq"], p["bv"], p["b_out"]], axis=1)
        if prev_scale is not None:        # previous layer's BatchNorm -> this projection
            bf = bf + prev_shift @ Wf
            Wf = prev_scale.reshape(-1, 1) * Wf
        scale = p["gamma"] / jnp.sqrt(p["var"] + eps)     # inference-mode BN affine
        shift = p["beta"] - p["mean"] * scale
        folded.append((Wf.astype(jnp.bfloat16), bf, p["We"], p["be"]))
        prev_scale, prev_shift = scale, shift
    # layer-3 BatchNorm folds into the classifier (mean-pool rows sum to 1).
    Wc_head = prev_scale.reshape(-1, 1) * Wc_h
    bc_eff = bc + prev_shift @ Wc_h
    return folded, (Wc_head, Wc_c, bc_eff)


# --------------------------------------------------------------------------- #
# Pure-JAX reference (same folded params / same bf16 projection casts)
# --------------------------------------------------------------------------- #
def reference_forward(x, src, tgt, edge_attr, pool, head_bias, folded_layers, wc_head):
    N = x.shape[0]
    h = x.astype(jnp.bfloat16)
    n_layers = len(folded_layers)
    for li, (wf, bf, we, be) in enumerate(folded_layers):
        H = wf.shape[1] // 4
        p = jnp.dot(h, wf, preferred_element_type=jnp.float32) + bf
        k, q, v, s = p[:, :H], p[:, H:2 * H], p[:, 2 * H:3 * H], p[:, 3 * H:]
        elin = edge_attr @ we + be
        msg = jax.nn.sigmoid((k[tgt] + elin) + (q[src] + elin)) * (v[src] + elin)
        agg = jax.ops.segment_sum(msg, tgt, num_segments=N) + s
        hn = jnp.where(agg > 0, agg, NEG_SLOPE * agg)
        h = hn.astype(jnp.bfloat16) if li < n_layers - 1 else hn
    pooled = pool @ h
    return pooled @ wc_head + head_bias


# --------------------------------------------------------------------------- #
if __name__ == "__main__":
    N, E, G = 16, 32, 2                       # nodes, edges, graphs
    in_channels, hidden, num_classes = 4, 32, 3
    num_clinical, edge_dim = 5, 1

    key = jax.random.PRNGKey(0)
    kx, ke1, ke2, ka, kc, kp = jax.random.split(key, 6)

    x = jax.random.normal(kx, (N, in_channels), dtype=jnp.float32)
    # edges kept within each of the two graphs (8 nodes, 16 edges each)
    src0 = jax.random.randint(ke1, (E // 2,), 0, N // 2)
    tgt0 = jax.random.randint(ke2, (E // 2,), 0, N // 2)
    src = jnp.concatenate([src0, src0 + N // 2]).astype(jnp.int32)   # edge_index[0]
    tgt = jnp.concatenate([tgt0, tgt0 + N // 2]).astype(jnp.int32)   # edge_index[1]
    edge_attr = jax.random.normal(ka, (E, edge_dim), dtype=jnp.float32)
    clinical = jax.random.normal(kc, (G, num_clinical), dtype=jnp.float32)
    batch = jnp.concatenate([jnp.zeros(N // 2, jnp.int32), jnp.ones(N // 2, jnp.int32)])

    # global_mean_pool operator (G, N) -- kept f32 so 1/count is not bf16-rounded.
    member = jax.nn.one_hot(batch, G, dtype=jnp.float32).T
    pool = member / jnp.maximum(member.sum(axis=1, keepdims=True), 1.0)

    raw_layers, raw_head = init_params(kp, in_channels, hidden, num_classes,
                                       num_clinical, edge_dim)
    folded_layers, folded_head = fold_params(raw_layers, raw_head)
    wc_head, wc_clin, bc_eff = folded_head

    out = clinical_gated_gcn(x, src, tgt, edge_attr, pool, clinical,
                             folded_layers, folded_head, edge_tile=8)
    out = jax.block_until_ready(out)

    head_bias = clinical @ wc_clin + bc_eff
    ref = reference_forward(x, src, tgt, edge_attr, pool, head_bias,
                            folded_layers, wc_head)
    assert out.shape == (G, num_classes), out.shape
    assert jnp.allclose(out, ref, rtol=1e-3, atol=1e-3), (out, ref)
    print("KERNEL_OK")
</pallas_src>

<mosaic_0001>
module attributes {stable_mosaic.version = 11 : i64} {
  func.func @_conv_kernel(%arg0: i32, %arg1: memref<32xi32, #tpu.memory_space<smem>>, %arg2: memref<32xi32, #tpu.memory_space<smem>>, %arg3: memref<16x4xbf16, #tpu.memory_space<vmem>>, %arg4: memref<8x1xf32, #tpu.memory_space<vmem>>, %arg5: memref<4x128xbf16, #tpu.memory_space<vmem>>, %arg6: memref<1x128xf32, #tpu.memory_space<vmem>>, %arg7: memref<1x32xf32, #tpu.memory_space<vmem>>, %arg8: memref<1x32xf32, #tpu.memory_space<vmem>>, %arg9: memref<16x32xbf16, #tpu.memory_space<vmem>>, %arg10: memref<16x32xf32, #tpu.memory_space<vmem>>, %arg11: memref<16x32xf32, #tpu.memory_space<vmem>>, %arg12: memref<16x32xf32, #tpu.memory_space<vmem>>, %arg13: memref<16x32xf32, #tpu.memory_space<vmem>>, %arg14: memref<8x32xf32, #tpu.memory_space<vmem>>) attributes {dimension_semantics = [#tpu.dimension_semantics<arbitrary>], iteration_bounds = array<i64: 4>, scalar_prefetch = 2 : i64, scratch_operands = 5 : i64, tpu.core_type = #tpu.core_type<tc>, window_params = [{pipeline_mode = #tpu.pipeline_mode<synchronous>, transform_indices = @transform_0, window_bounds = array<i64: 16, 4>}, {transform_indices = @transform_1, window_bounds = array<i64: 8, 1>}, {pipeline_mode = #tpu.pipeline_mode<synchronous>, transform_indices = @transform_2, window_bounds = array<i64: 4, 128>}, {pipeline_mode = #tpu.pipeline_mode<synchronous>, transform_indices = @transform_3, window_bounds = array<i64: 1, 128>}, {pipeline_mode = #tpu.pipeline_mode<synchronous>, transform_indices = @transform_4, window_bounds = array<i64: 1, 32>}, {pipeline_mode = #tpu.pipeline_mode<synchronous>, transform_indices = @transform_5, window_bounds = array<i64: 1, 32>}, {pipeline_mode = #tpu.pipeline_mode<synchronous>, transform_indices = @transform_6, window_bounds = array<i64: 16, 32>}]} {
    %c0_i32 = arith.constant 0 : i32
    %0 = arith.cmpi eq, %arg0, %c0_i32 : i32
    %1 = arith.extui %0 : i1 to i32
    %c0_i32_0 = arith.constant 0 : i32
    %2 = arith.cmpi ne, %1, %c0_i32_0 : i32
    scf.if %2 {
      %c0_66 = arith.constant 0 : index
      %c0_67 = arith.constant 0 : index
      %224 = vector.load %arg3[%c0_66, %c0_67] : memref<16x4xbf16, #tpu.memory_space<vmem>>, vector<16x4xbf16>
      %c0_68 = arith.constant 0 : index
      %c0_69 = arith.constant 0 : index
      %225 = vector.load %arg5[%c0_68, %c0_69] : memref<4x128xbf16, #tpu.memory_space<vmem>>, vector<4x128xbf16>
      %cst_70 = arith.constant dense<0.000000e+00> : vector<16x128xf32>
      %226 = tpu.matmul %224, %225, %cst_70 {dimension_numbers = #tpu.dot_dimension_numbers<[1], [0], [0], [1], [0, 0, 1, 1], [], []>} : vector<16x4xbf16>, vector<4x128xbf16>, vector<16x128xf32> -> vector<16x128xf32>
      %c0_71 = arith.constant 0 : index
      %c0_72 = arith.constant 0 : index
      %227 = vector.load %arg6[%c0_71, %c0_72] : memref<1x128xf32, #tpu.memory_space<vmem>>, vector<1x128xf32>
      %228 = vector.broadcast %227 : vector<1x128xf32> to vector<16x128xf32>
      %229 = arith.addf %226, %228 : vector<16x128xf32>
      %230 = vector.extract_strided_slice %229 {offsets = [0, 0], sizes = [16, 32], strides = [1, 1]} : vector<16x128xf32> to vector<16x32xf32>
      %c0_73 = arith.constant 0 : index
      %c0_74 = arith.constant 0 : index
      %231 = vector.load %arg10[%c0_73, %c0_74] : memref<16x32xf32, #tpu.memory_space<vmem>>, vector<16x32xf32>
      tpu.vector_store %arg10[%c0_73, %c0_74], %230 {strides = array<i32>} : memref<16x32xf32, #tpu.memory_space<vmem>>, vector<16x32xf32>,
      %232 = vector.extract_strided_slice %229 {offsets = [0, 32], sizes = [16, 32], strides = [1, 1]} : vector<16x128xf32> to vector<16x32xf32>
      %c0_75 = arith.constant 0 : index
      %c0_76 = arith.constant 0 : index
      %233 = vector.load %arg11[%c0_75, %c0_76] : memref<16x32xf32, #tpu.memory_space<vmem>>, vector<16x32xf32>
      tpu.vector_store %arg11[%c0_75, %c0_76], %232 {strides = array<i32>} : memref<16x32xf32, #tpu.memory_space<vmem>>, vector<16x32xf32>,
      %234 = vector.extract_strided_slice %229 {offsets = [0, 64], sizes = [16, 32], strides = [1, 1]} : vector<16x128xf32> to vector<16x32xf32>
      %c0_77 = arith.constant 0 : index
      %c0_78 = arith.constant 0 : index
      %235 = vector.load %arg12[%c0_77, %c0_78] : memref<16x32xf32, #tpu.memory_space<vmem>>, vector<16x32xf32>
      tpu.vector_store %arg12[%c0_77, %c0_78], %234 {strides = array<i32>} : memref<16x32xf32, #tpu.memory_space<vmem>>, vector<16x32xf32>,
      %236 = vector.extract_strided_slice %229 {offsets = [0, 96], sizes = [16, 32], strides = [1, 1]} : vector<16x128xf32> to vector<16x32xf32>
      %c0_79 = arith.constant 0 : index
      %c0_80 = arith.constant 0 : index
      %237 = vector.load %arg13[%c0_79, %c0_80] : memref<16x32xf32, #tpu.memory_space<vmem>>, vector<16x32xf32>
      tpu.vector_store %arg13[%c0_79, %c0_80], %236 {strides = array<i32>} : memref<16x32xf32, #tpu.memory_space<vmem>>, vector<16x32xf32>,
    } else {
    }
    %c0 = arith.constant 0 : index
    %c0_1 = arith.constant 0 : index
    %3 = vector.load %arg4[%c0, %c0_1] : memref<8x1xf32, #tpu.memory_space<vmem>>, vector<8x1xf32>
    %c0_2 = arith.constant 0 : index
    %c0_3 = arith.constant 0 : index
    %4 = vector.load %arg7[%c0_2, %c0_3] : memref<1x32xf32, #tpu.memory_space<vmem>>, vector<1x32xf32>
    %5 = vector.broadcast %3 : vector<8x1xf32> to vector<8x32xf32>
    %6 = vector.broadcast %4 : vector<1x32xf32> to vector<8x32xf32>
    %7 = arith.mulf %5, %6 : vector<8x32xf32>
    %c0_4 = arith.constant 0 : index
    %c0_5 = arith.constant 0 : index
    %8 = vector.load %arg8[%c0_4, %c0_5] : memref<1x32xf32, #tpu.memory_space<vmem>>, vector<1x32xf32>
    %9 = vector.broadcast %8 : vector<1x32xf32> to vector<8x32xf32>
    %10 = arith.addf %7, %9 : vector<8x32xf32>
    %c0_6 = arith.constant 0 : index
    %c0_7 = arith.constant 0 : index
    %11 = vector.load %arg14[%c0_6, %c0_7] : memref<8x32xf32, #tpu.memory_space<vmem>>, vector<8x32xf32>
    tpu.vector_store %arg14[%c0_6, %c0_7], %10 {strides = array<i32>} : memref<8x32xf32, #tpu.memory_space<vmem>>, vector<8x32xf32>,
    %c8_i32 = arith.constant 8 : i32
    %12 = arith.muli %arg0, %c8_i32 : i32
    %c0_i32_8 = arith.constant 0 : i32
    %13 = arith.addi %12, %c0_i32_8 : i32
    %14 = arith.index_cast %13 : i32 to index
    %15 = memref.load %arg1[%14] : memref<32xi32, #tpu.memory_space<smem>>
    %16 = arith.index_cast %13 : i32 to index
    %17 = memref.load %arg2[%16] : memref<32xi32, #tpu.memory_space<smem>>
    %18 = arith.index_cast %c0_i32_8 : i32 to index
    %c0_9 = arith.constant 0 : index
    %19 = vector.load %arg14[%18, %c0_9] : memref<8x32xf32, #tpu.memory_space<vmem>>, vector<1x32xf32>
    %20 = arith.index_cast %17 : i32 to index
    %c0_10 = arith.constant 0 : index
    %21 = vector.load %arg10[%20, %c0_10] : memref<16x32xf32, #tpu.memory_space<vmem>>, vector<1x32xf32>
    %22 = arith.addf %21, %19 : vector<1x32xf32>
    %23 = arith.index_cast %15 : i32 to index
    %c0_11 = arith.constant 0 : index
    %24 = vector.load %arg11[%23, %c0_11] : memref<16x32xf32, #tpu.memory_space<vmem>>, vector<1x32xf32>
    %25 = arith.addf %24, %19 : vector<1x32xf32>
    %26 = arith.index_cast %15 : i32 to index
    %c0_12 = arith.constant 0 : index
    %27 = vector.load %arg12[%26, %c0_12] : memref<16x32xf32, #tpu.memory_space<vmem>>, vector<1x32xf32>
    %28 = arith.addf %27, %19 : vector<1x32xf32>
    %29 = arith.addf %22, %25 : vector<1x32xf32>
    %30 = arith.negf %29 : vector<1x32xf32>
    %31 = math.exp %30 : vector<1x32xf32>
    %cst = arith.constant 1.000000e+00 : f32
    %32 = vector.broadcast %cst : f32 to vector<1x32xf32>
    %33 = arith.addf %32, %31 : vector<1x32xf32>
    %34 = arith.divf %32, %33 : vector<1x32xf32>
    %35 = arith.mulf %34, %28 : vector<1x32xf32>
    %c32_i32 = arith.constant 32 : i32
    %36 = arith.cmpi slt, %13, %c32_i32 : i32
    %37 = arith.extui %36 : i1 to i32
    %c0_i32_13 = arith.constant 0 : i32
    %38 = arith.cmpi ne, %37, %c0_i32_13 : i32
    scf.if %38 {
      %224 = arith.index_cast %17 : i32 to index
      %c0_66 = arith.constant 0 : index
      %225 = vector.load %arg13[%224, %c0_66] : memref<16x32xf32, #tpu.memory_space<vmem>>, vector<1x32xf32>
      %226 = arith.addf %225, %35 : vector<1x32xf32>
      %227 = arith.index_cast %17 : i32 to index
      %c0_67 = arith.constant 0 : index
      %228 = vector.load %arg13[%227, %c0_67] : memref<16x32xf32, #tpu.memory_space<vmem>>, vector<1x32xf32>
      tpu.vector_store %arg13[%227, %c0_67], %226 {strides = array<i32>} : memref<16x32xf32, #tpu.memory_space<vmem>>, vector<1x32xf32>,
    } else {
    }
    %c1_i32 = arith.constant 1 : i32
    %39 = arith.addi %12, %c1_i32 : i32
    %40 = arith.index_cast %39 : i32 to index
    %41 = memref.load %arg1[%40] : memref<32xi32, #tpu.memory_space<smem>>
    %42 = arith.index_cast %39 : i32 to index
    %43 = memref.load %arg2[%42] : memref<32xi32, #tpu.memory_space<smem>>
    %44 = arith.index_cast %c1_i32 : i32 to index
    %c0_14 = arith.constant 0 : index
    %45 = vector.load %arg14[%44, %c0_14] : memref<8x32xf32, #tpu.memory_space<vmem>>, vector<1x32xf32>
    %46 = arith.index_cast %43 : i32 to index
    %c0_15 = arith.constant 0 : index
    %47 = vector.load %arg10[%46, %c0_15] : memref<16x32xf32, #tpu.memory_space<vmem>>, vector<1x32xf32>
    %48 = arith.addf %47, %45 : vector<1x32xf32>
    %49 = arith.index_cast %41 : i32 to index
    %c0_16 = arith.constant 0 : index
    %50 = vector.load %arg11[%49, %c0_16] : memref<16x32xf32, #tpu.memory_space<vmem>>, vector<1x32xf32>
    %51 = arith.addf %50, %45 : vector<1x32xf32>
    %52 = arith.index_cast %41 : i32 to index
    %c0_17 = arith.constant 0 : index
    %53 = vector.load %arg12[%52, %c0_17] : memref<16x32xf32, #tpu.memory_space<vmem>>, vector<1x32xf32>
    %54 = arith.addf %53, %45 : vector<1x32xf32>
    %55 = arith.addf %48, %51 : vector<1x32xf32>
    %56 = arith.negf %55 : vector<1x32xf32>
    %57 = math.exp %56 : vector<1x32xf32>
    %cst_18 = arith.constant 1.000000e+00 : f32
    %58 = vector.broadcast %cst_18 : f32 to vector<1x32xf32>
    %59 = arith.addf %58, %57 : vector<1x32xf32>
    %60 = arith.divf %58, %59 : vector<1x32xf32>
    %61 = arith.mulf %60, %54 : vector<1x32xf32>
    %c32_i32_19 = arith.constant 32 : i32
    %62 = arith.cmpi slt, %39, %c32_i32_19 : i32
    %63 = arith.extui %62 : i1 to i32
    %c0_i32_20 = arith.constant 0 : i32
    %64 = arith.cmpi ne, %63, %c0_i32_20 : i32
    scf.if %64 {
      %224 = arith.index_cast %43 : i32 to index
      %c0_66 = arith.constant 0 : index
      %225 = vector.load %arg13[%224, %c0_66] : memref<16x32xf32, #tpu.memory_space<vmem>>, vector<1x32xf32>
      %226 = arith.addf %225, %61 : vector<1x32xf32>
      %227 = arith.index_cast %43 : i32 to index
      %c0_67 = arith.constant 0 : index
      %228 = vector.load %arg13[%227, %c0_67] : memref<16x32xf32, #tpu.memory_space<vmem>>, vector<1x32xf32>
      tpu.vector_store %arg13[%227, %c0_67], %226 {strides = array<i32>} : memref<16x32xf32, #tpu.memory_space<vmem>>, vector<1x32xf32>,
    } else {
    }
    %c2_i32 = arith.constant 2 : i32
    %65 = arith.addi %12, %c2_i32 : i32
    %66 = arith.index_cast %65 : i32 to index
    %67 = memref.load %arg1[%66] : memref<32xi32, #tpu.memory_space<smem>>
    %68 = arith.index_cast %65 : i32 to index
    %69 = memref.load %arg2[%68] : memref<32xi32, #tpu.memory_space<smem>>
    %70 = arith.index_cast %c2_i32 : i32 to index
    %c0_21 = arith.constant 0 : index
    %71 = vector.load %arg14[%70, %c0_21] : memref<8x32xf32, #tpu.memory_space<vmem>>, vector<1x32xf32>
    %72 = arith.index_cast %69 : i32 to index
    %c0_22 = arith.constant 0 : index
    %73 = vector.load %arg10[%72, %c0_22] : memref<16x32xf32, #tpu.memory_space<vmem>>, vector<1x32xf32>
    %74 = arith.addf %73, %71 : vector<1x32xf32>
    %75 = arith.index_cast %67 : i32 to index
    %c0_23 = arith.constant 0 : index
    %76 = vector.load %arg11[%75, %c0_23] : memref<16x32xf32, #tpu.memory_space<vmem>>, vector<1x32xf32>
    %77 = arith.addf %76, %71 : vector<1x32xf32>
    %78 = arith.index_cast %67 : i32 to index
    %c0_24 = arith.constant 0 : index
    %79 = vector.load %arg12[%78, %c0_24] : memref<16x32xf32, #tpu.memory_space<vmem>>, vector<1x32xf32>
    %80 = arith.addf %79, %71 : vector<1x32xf32>
    %81 = arith.addf %74, %77 : vector<1x32xf32>
    %82 = arith.negf %81 : vector<1x32xf32>
    %83 = math.exp %82 : vector<1x32xf32>
    %cst_25 = arith.constant 1.000000e+00 : f32
    %84 = vector.broadcast %cst_25 : f32 to vector<1x32xf32>
    %85 = arith.addf %84, %83 : vector<1x32xf32>
    %86 = arith.divf %84, %85 : vector<1x32xf32>
    %87 = arith.mulf %86, %80 : vector<1x32xf32>
    %c32_i32_26 = arith.constant 32 : i32
    %88 = arith.cmpi slt, %65, %c32_i32_26 : i32
    %89 = arith.extui %88 : i1 to i32
    %c0_i32_27 = arith.constant 0 : i32
    %90 = arith.cmpi ne, %89, %c0_i32_27 : i32
    scf.if %90 {
      %224 = arith.index_cast %69 : i32 to index
      %c0_66 = arith.constant 0 : index
      %225 = vector.load %arg13[%224, %c0_66] : memref<16x32xf32, #tpu.memory_space<vmem>>, vector<1x32xf32>
      %226 = arith.addf %225, %87 : vector<1x32xf32>
      %227 = arith.index_cast %69 : i32 to index
      %c0_67 = arith.constant 0 : index
      %228 = vector.load %arg13[%227, %c0_67] : memref<16x32xf32, #tpu.memory_space<vmem>>, vector<1x32xf32>
      tpu.vector_store %arg13[%227, %c0_67], %226 {strides = array<i32>} : memref<16x32xf32, #tpu.memory_space<vmem>>, vector<1x32xf32>,
    } else {
    }
    %c3_i32 = arith.constant 3 : i32
    %91 = arith.addi %12, %c3_i32 : i32
    %92 = arith.index_cast %91 : i32 to index
    %93 = memref.load %arg1[%92] : memref<32xi32, #tpu.memory_space<smem>>
    %94 = arith.index_cast %91 : i32 to index
    %95 = memref.load %arg2[%94] : memref<32xi32, #tpu.memory_space<smem>>
    %96 = arith.index_cast %c3_i32 : i32 to index
    %c0_28 = arith.constant 0 : index
    %97 = vector.load %arg14[%96, %c0_28] : memref<8x32xf32, #tpu.memory_space<vmem>>, vector<1x32xf32>
    %98 = arith.index_cast %95 : i32 to index
    %c0_29 = arith.constant 0 : index
    %99 = vector.load %arg10[%98, %c0_29] : memref<16x32xf32, #tpu.memory_space<vmem>>, vector<1x32xf32>
    %100 = arith.addf %99, %97 : vector<1x32xf32>
    %101 = arith.index_cast %93 : i32 to index
    %c0_30 = arith.constant 0 : index
    %102 = vector.load %arg11[%101, %c0_30] : memref<16x32xf32, #tpu.memory_space<vmem>>, vector<1x32xf32>
    %103 = arith.addf %102, %97 : vector<1x32xf32>
    %104 = arith.index_cast %93 : i32 to index
    %c0_31 = arith.constant 0 : index
    %105 = vector.load %arg12[%104, %c0_31] : memref<16x32xf32, #tpu.memory_space<vmem>>, vector<1x32xf32>
    %106 = arith.addf %105, %97 : vector<1x32xf32>
    %107 = arith.addf %100, %103 : vector<1x32xf32>
    %108 = arith.negf %107 : vector<1x32xf32>
    %109 = math.exp %108 : vector<1x32xf32>
    %cst_32 = arith.constant 1.000000e+00 : f32
    %110 = vector.broadcast %cst_32 : f32 to vector<1x32xf32>
    %111 = arith.addf %110, %109 : vector<1x32xf32>
    %112 = arith.divf %110, %111 : vector<1x32xf32>
    %113 = arith.mulf %112, %106 : vector<1x32xf32>
    %c32_i32_33 = arith.constant 32 : i32
    %114 = arith.cmpi slt, %91, %c32_i32_33 : i32
    %115 = arith.extui %114 : i1 to i32
    %c0_i32_34 = arith.constant 0 : i32
    %116 = arith.cmpi ne, %115, %c0_i32_34 : i32
    scf.if %116 {
      %224 = arith.index_cast %95 : i32 to index
      %c0_66 = arith.constant 0 : index
      %225 = vector.load %arg13[%224, %c0_66] : memref<16x32xf32, #tpu.memory_space<vmem>>, vector<1x32xf32>
      %226 = arith.addf %225, %113 : vector<1x32xf32>
      %227 = arith.index_cast %95 : i32 to index
      %c0_67 = arith.constant 0 : index
      %228 = vector.load %arg13[%227, %c0_67] : memref<16x32xf32, #tpu.memory_space<vmem>>, vector<1x32xf32>
      tpu.vector_store %arg13[%227, %c0_67], %226 {strides = array<i32>} : memref<16x32xf32, #tpu.memory_space<vmem>>, vector<1x32xf32>,
    } else {
    }
    %c4_i32 = arith.constant 4 : i32
    %117 = arith.addi %12, %c4_i32 : i32
    %118 = arith.index_cast %117 : i32 to index
    %119 = memref.load %arg1[%118] : memref<32xi32, #tpu.memory_space<smem>>
    %120 = arith.index_cast %117 : i32 to index
    %121 = memref.load %arg2[%120] : memref<32xi32, #tpu.memory_space<smem>>
    %122 = arith.index_cast %c4_i32 : i32 to index
    %c0_35 = arith.constant 0 : index
    %123 = vector.load %arg14[%122, %c0_35] : memref<8x32xf32, #tpu.memory_space<vmem>>, vector<1x32xf32>
    %124 = arith.index_cast %121 : i32 to index
    %c0_36 = arith.constant 0 : index
    %125 = vector.load %arg10[%124, %c0_36] : memref<16x32xf32, #tpu.memory_space<vmem>>, vector<1x32xf32>
    %126 = arith.addf %125, %123 : vector<1x32xf32>
    %127 = arith.index_cast %119 : i32 to index
    %c0_37 = arith.constant 0 : index
    %128 = vector.load %arg11[%127, %c0_37] : memref<16x32xf32, #tpu.memory_space<vmem>>, vector<1x32xf32>
    %129 = arith.addf %128, %123 : vector<1x32xf32>
    %130 = arith.index_cast %119 : i32 to index
    %c0_38 = arith.constant 0 : index
    %131 = vector.load %arg12[%130, %c0_38] : memref<16x32xf32, #tpu.memory_space<vmem>>, vector<1x32xf32>
    %132 = arith.addf %131, %123 : vector<1x32xf32>
    %133 = arith.addf %126, %129 : vector<1x32xf32>
    %134 = arith.negf %133 : vector<1x32xf32>
    %135 = math.exp %134 : vector<1x32xf32>
    %cst_39 = arith.constant 1.000000e+00 : f32
    %136 = vector.broadcast %cst_39 : f32 to vector<1x32xf32>
    %137 = arith.addf %136, %135 : vector<1x32xf32>
    %138 = arith.divf %136, %137 : vector<1x32xf32>
    %139 = arith.mulf %138, %132 : vector<1x32xf32>
    %c32_i32_40 = arith.constant 32 : i32
    %140 = arith.cmpi slt, %117, %c32_i32_40 : i32
    %141 = arith.extui %140 : i1 to i32
    %c0_i32_41 = arith.constant 0 : i32
    %142 = arith.cmpi ne, %141, %c0_i32_41 : i32
    scf.if %142 {
      %224 = arith.index_cast %121 : i32 to index
      %c0_66 = arith.constant 0 : index
      %225 = vector.load %arg13[%224, %c0_66] : memref<16x32xf32, #tpu.memory_space<vmem>>, vector<1x32xf32>
      %226 = arith.addf %225, %139 : vector<1x32xf32>
      %227 = arith.index_cast %121 : i32 to index
      %c0_67 = arith.constant 0 : index
      %228 = vector.load %arg13[%227, %c0_67] : memref<16x32xf32, #tpu.memory_space<vmem>>, vector<1x32xf32>
      tpu.vector_store %arg13[%227, %c0_67], %226 {strides = array<i32>} : memref<16x32xf32, #tpu.memory_space<vmem>>, vector<1x32xf32>,
    } else {
    }
    %c5_i32 = arith.constant 5 : i32
    %143 = arith.addi %12, %c5_i32 : i32
    %144 = arith.index_cast %143 : i32 to index
    %145 = memref.load %arg1[%144] : memref<32xi32, #tpu.memory_space<smem>>
    %146 = arith.index_cast %143 : i32 to index
    %147 = memref.load %arg2[%146] : memref<32xi32, #tpu.memory_space<smem>>
    %148 = arith.index_cast %c5_i32 : i32 to index
    %c0_42 = arith.constant 0 : index
    %149 = vector.load %arg14[%148, %c0_42] : memref<8x32xf32, #tpu.memory_space<vmem>>, vector<1x32xf32>
    %150 = arith.index_cast %147 : i32 to index
    %c0_43 = arith.constant 0 : index
    %151 = vector.load %arg10[%150, %c0_43] : memref<16x32xf32, #tpu.memory_space<vmem>>, vector<1x32xf32>
    %152 = arith.addf %151, %149 : vector<1x32xf32>
    %153 = arith.index_cast %145 : i32 to index
    %c0_44 = arith.constant 0 : index
    %154 = vector.load %arg11[%153, %c0_44] : memref<16x32xf32, #tpu.memory_space<vmem>>, vector<1x32xf32>
    %155 = arith.addf %154, %149 : vector<1x32xf32>
    %156 = arith.index_cast %145 : i32 to index
    %c0_45 = arith.constant 0 : index
    %157 = vector.load %arg12[%156, %c0_45] : memref<16x32xf32, #tpu.memory_space<vmem>>, vector<1x32xf32>
    %158 = arith.addf %157, %149 : vector<1x32xf32>
    %159 = arith.addf %152, %155 : vector<1x32xf32>
    %160 = arith.negf %159 : vector<1x32xf32>
    %161 = math.exp %160 : vector<1x32xf32>
    %cst_46 = arith.constant 1.000000e+00 : f32
    %162 = vector.broadcast %cst_46 : f32 to vector<1x32xf32>
    %163 = arith.addf %162, %161 : vector<1x32xf32>
    %164 = arith.divf %162, %163 : vector<1x32xf32>
    %165 = arith.mulf %164, %158 : vector<1x32xf32>
    %c32_i32_47 = arith.constant 32 : i32
    %166 = arith.cmpi slt, %143, %c32_i32_47 : i32
    %167 = arith.extui %166 : i1 to i32
    %c0_i32_48 = arith.constant 0 : i32
    %168 = arith.cmpi ne, %167, %c0_i32_48 : i32
    scf.if %168 {
      %224 = arith.index_cast %147 : i32 to index
      %c0_66 = arith.constant 0 : index
      %225 = vector.load %arg13[%224, %c0_66] : memref<16x32xf32, #tpu.memory_space<vmem>>, vector<1x32xf32>
      %226 = arith.addf %225, %165 : vector<1x32xf32>
      %227 = arith.index_cast %147 : i32 to index
      %c0_67 = arith.constant 0 : index
      %228 = vector.load %arg13[%227, %c0_67] : memref<16x32xf32, #tpu.memory_space<vmem>>, vector<1x32xf32>
      tpu.vector_store %arg13[%227, %c0_67], %226 {strides = array<i32>} : memref<16x32xf32, #tpu.memory_space<vmem>>, vector<1x32xf32>,
    } else {
    }
    %c6_i32 = arith.constant 6 : i32
    %169 = arith.addi %12, %c6_i32 : i32
    %170 = arith.index_cast %169 : i32 to index
    %171 = memref.load %arg1[%170] : memref<32xi32, #tpu.memory_space<smem>>
    %172 = arith.index_cast %169 : i32 to index
    %173 = memref.load %arg2[%172] : memref<32xi32, #tpu.memory_space<smem>>
    %174 = arith.index_cast %c6_i32 : i32 to index
    %c0_49 = arith.constant 0 : index
    %175 = vector.load %arg14[%174, %c0_49] : memref<8x32xf32, #tpu.memory_space<vmem>>, vector<1x32xf32>
    %176 = arith.index_cast %173 : i32 to index
    %c0_50 = arith.constant 0 : index
    %177 = vector.load %arg10[%176, %c0_50] : memref<16x32xf32, #tpu.memory_space<vmem>>, vector<1x32xf32>
    %178 = arith.addf %177, %175 : vector<1x32xf32>
    %179 = arith.index_cast %171 : i32 to index
    %c0_51 = arith.constant 0 : index
    %180 = vector.load %arg11[%179, %c0_51] : memref<16x32xf32, #tpu.memory_space<vmem>>, vector<1x32xf32>
    %181 = arith.addf %180, %175 : vector<1x32xf32>
    %182 = arith.index_cast %171 : i32 to index
    %c0_52 = arith.constant 0 : index
    %183 = vector.load %arg12[%182, %c0_52] : memref<16x32xf32, #tpu.memory_space<vmem>>, vector<1x32xf32>
    %184 = arith.addf %183, %175 : vector<1x32xf32>
    %185 = arith.addf %178, %181 : vector<1x32xf32>
    %186 = arith.negf %185 : vector<1x32xf32>
    %187 = math.exp %186 : vector<1x32xf32>
    %cst_53 = arith.constant 1.000000e+00 : f32
    %188 = vector.broadcast %cst_53 : f32 to vector<1x32xf32>
    %189 = arith.addf %188, %187 : vector<1x32xf32>
    %190 = arith.divf %188, %189 : vector<1x32xf32>
    %191 = arith.mulf %190, %184 : vector<1x32xf32>
    %c32_i32_54 = arith.constant 32 : i32
    %192 = arith.cmpi slt, %169, %c32_i32_54 : i32
    %193 = arith.extui %192 : i1 to i32
    %c0_i32_55 = arith.constant 0 : i32
    %194 = arith.cmpi ne, %193, %c0_i32_55 : i32
    scf.if %194 {
      %224 = arith.index_cast %173 : i32 to index
      %c0_66 = arith.constant 0 : index
      %225 = vector.load %arg13[%224, %c0_66] : memref<16x32xf32, #tpu.memory_space<vmem>>, vector<1x32xf32>
      %226 = arith.addf %225, %191 : vector<1x32xf32>
      %227 = arith.index_cast %173 : i32 to index
      %c0_67 = arith.constant 0 : index
      %228 = vector.load %arg13[%227, %c0_67] : memref<16x32xf32, #tpu.memory_space<vmem>>, vector<1x32xf32>
      tpu.vector_store %arg13[%227, %c0_67], %226 {strides = array<i32>} : memref<16x32xf32, #tpu.memory_space<vmem>>, vector<1x32xf32>,
    } else {
    }
    %c7_i32 = arith.constant 7 : i32
    %195 = arith.addi %12, %c7_i32 : i32
    %196 = arith.index_cast %195 : i32 to index
    %197 = memref.load %arg1[%196] : memref<32xi32, #tpu.memory_space<smem>>
    %198 = arith.index_cast %195 : i32 to index
    %199 = memref.load %arg2[%198] : memref<32xi32, #tpu.memory_space<smem>>
    %200 = arith.index_cast %c7_i32 : i32 to index
    %c0_56 = arith.constant 0 : index
    %201 = vector.load %arg14[%200, %c0_56] : memref<8x32xf32, #tpu.memory_space<vmem>>, vector<1x32xf32>
    %202 = arith.index_cast %199 : i32 to index
    %c0_57 = arith.constant 0 : index
    %203 = vector.load %arg10[%202, %c0_57] : memref<16x32xf32, #tpu.memory_space<vmem>>, vector<1x32xf32>
    %204 = arith.addf %203, %201 : vector<1x32xf32>
    %205 = arith.index_cast %197 : i32 to index
    %c0_58 = arith.constant 0 : index
    %206 = vector.load %arg11[%205, %c0_58] : memref<16x32xf32, #tpu.memory_space<vmem>>, vector<1x32xf32>
    %207 = arith.addf %206, %201 : vector<1x32xf32>
    %208 = arith.index_cast %197 : i32 to index
    %c0_59 = arith.constant 0 : index
    %209 = vector.load %arg12[%208, %c0_59] : memref<16x32xf32, #tpu.memory_space<vmem>>, vector<1x32xf32>
    %210 = arith.addf %209, %201 : vector<1x32xf32>
    %211 = arith.addf %204, %207 : vector<1x32xf32>
    %212 = arith.negf %211 : vector<1x32xf32>
    %213 = math.exp %212 : vector<1x32xf32>
    %cst_60 = arith.constant 1.000000e+00 : f32
    %214 = vector.broadcast %cst_60 : f32 to vector<1x32xf32>
    %215 = arith.addf %214, %213 : vector<1x32xf32>
    %216 = arith.divf %214, %215 : vector<1x32xf32>
    %217 = arith.mulf %216, %210 : vector<1x32xf32>
    %c32_i32_61 = arith.constant 32 : i32
    %218 = arith.cmpi slt, %195, %c32_i32_61 : i32
    %219 = arith.extui %218 : i1 to i32
    %c0_i32_62 = arith.constant 0 : i32
    %220 = arith.cmpi ne, %219, %c0_i32_62 : i32
    scf.if %220 {
      %224 = arith.index_cast %199 : i32 to index
      %c0_66 = arith.constant 0 : index
      %225 = vector.load %arg13[%224, %c0_66] : memref<16x32xf32, #tpu.memory_space<vmem>>, vector<1x32xf32>
      %226 = arith.addf %225, %217 : vector<1x32xf32>
      %227 = arith.index_cast %199 : i32 to index
      %c0_67 = arith.constant 0 : index
      %228 = vector.load %arg13[%227, %c0_67] : memref<16x32xf32, #tpu.memory_space<vmem>>, vector<1x32xf32>
      tpu.vector_store %arg13[%227, %c0_67], %226 {strides = array<i32>} : memref<16x32xf32, #tpu.memory_space<vmem>>, vector<1x32xf32>,
    } else {
    }
    %c8_i32_63 = arith.constant 8 : i32
    %c3_i32_64 = arith.constant 3 : i32
    %221 = arith.cmpi eq, %arg0, %c3_i32_64 : i32
    %222 = arith.extui %221 : i1 to i32
    %c0_i32_65 = arith.constant 0 : i32
    %223 = arith.cmpi ne, %222, %c0_i32_65 : i32
    scf.if %223 {
      %c0_66 = arith.constant 0 : index
      %c0_67 = arith.constant 0 : index
      %224 = vector.load %arg13[%c0_66, %c0_67] : memref<16x32xf32, #tpu.memory_space<vmem>>, vector<16x32xf32>
      %cst_68 = arith.constant 0.000000e+00 : f32
      %225 = vector.broadcast %cst_68 : f32 to vector<16x32xf32>
      %226 = arith.cmpf ogt, %224, %225 : vector<16x32xf32>
      %cst_69 = arith.constant 0.00999999977 : f32
      %227 = vector.broadcast %cst_69 : f32 to vector<16x32xf32>
      %228 = arith.mulf %227, %224 : vector<16x32xf32>
      %229 = arith.select %226, %224, %228 : vector<16x32xi1>, vector<16x32xf32>
      %230 = arith.truncf %229 : vector<16x32xf32> to vector<16x32xbf16>
      %c0_70 = arith.constant 0 : index
      %c0_71 = arith.constant 0 : index
      %231 = vector.load %arg9[%c0_70, %c0_71] : memref<16x32xbf16, #tpu.memory_space<vmem>>, vector<16x32xbf16>
      tpu.vector_store %arg9[%c0_70, %c0_71], %230 {strides = array<i32>} : memref<16x32xbf16, #tpu.memory_space<vmem>>, vector<16x32xbf16>,
    } else {
    }
    return
  }
  func.func @transform_0(%arg0: i32, %arg1: memref<32xi32, #tpu.memory_space<smem>>, %arg2: memref<32xi32, #tpu.memory_space<smem>>) -> (i32, i32) {
    %c0_i32 = arith.constant 0 : i32
    %c0_i32_0 = arith.constant 0 : i32
    %c0_i32_1 = arith.constant 0 : i32
    return %c0_i32, %c0_i32_0 : i32, i32
  }
  func.func @transform_1(%arg0: i32, %arg1: memref<32xi32, #tpu.memory_space<smem>>, %arg2: memref<32xi32, #tpu.memory_space<smem>>) -> (i32, i32) {
    %c0_i32 = arith.constant 0 : i32
    %c0_i32_0 = arith.constant 0 : i32
    return %arg0, %c0_i32 : i32, i32
  }
  func.func @transform_2(%arg0: i32, %arg1: memref<32xi32, #tpu.memory_space<smem>>, %arg2: memref<32xi32, #tpu.memory_space<smem>>) -> (i32, i32) {
    %c0_i32 = arith.constant 0 : i32
    %c0_i32_0 = arith.constant 0 : i32
    %c0_i32_1 = arith.constant 0 : i32
    return %c0_i32, %c0_i32_0 : i32, i32
  }
  func.func @transform_3(%arg0: i32, %arg1: memref<32xi32, #tpu.memory_space<smem>>, %arg2: memref<32xi32, #tpu.memory_space<smem>>) -> (i32, i32) {
    %c0_i32 = arith.constant 0 : i32
    %c0_i32_0 = arith.constant 0 : i32
    %c0_i32_1 = arith.constant 0 : i32
    return %c0_i32, %c0_i32_0 : i32, i32
  }
  func.func @transform_4(%arg0: i32, %arg1: memref<32xi32, #tpu.memory_space<smem>>, %arg2: memref<32xi32, #tpu.memory_space<smem>>) -> (i32, i32) {
    %c0_i32 = arith.constant 0 : i32
    %c0_i32_0 = arith.constant 0 : i32
    %c0_i32_1 = arith.constant 0 : i32
    return %c0_i32, %c0_i32_0 : i32, i32
  }
  func.func @transform_5(%arg0: i32, %arg1: memref<32xi32, #tpu.memory_space<smem>>, %arg2: memref<32xi32, #tpu.memory_space<smem>>) -> (i32, i32) {
    %c0_i32 = arith.constant 0 : i32
    %c0_i32_0 = arith.constant 0 : i32
    %c0_i32_1 = arith.constant 0 : i32
    return %c0_i32, %c0_i32_0 : i32, i32
  }
  func.func @transform_6(%arg0: i32, %arg1: memref<32xi32, #tpu.memory_space<smem>>, %arg2: memref<32xi32, #tpu.memory_space<smem>>) -> (i32, i32) {
    %c0_i32 = arith.constant 0 : i32
    %c0_i32_0 = arith.constant 0 : i32
    %c0_i32_1 = arith.constant 0 : i32
    return %c0_i32, %c0_i32_0 : i32, i32
  }
}

</mosaic_0001>

<llo_original>
// kernel: tpu_custom_call.1
$region0: #{tpu_custom_call.1}
  #allocation0 [shape = 'u32[]', space=smem, size = 0x4, offset = 0x4, fixed_abs, tag = 'smem constant byte address 0x4 - core index']
  #allocation1 [shape = 'u32[72,128]{1,0:T(1,128)}', space=vmem, size = 0x9000, scoped, tag = 'internal scratch']
  #allocation2 [shape = 'f32[16,32]{1,0:T(8,128)}', space=vmem, size = 0x2000, scoped, tag = 'scratch operand']
  #allocation3 [shape = 'f32[16,32]{1,0:T(8,128)}', space=vmem, size = 0x2000, scoped, tag = 'scratch operand']
  #allocation4 [shape = 'f32[16,32]{1,0:T(8,128)}', space=vmem, size = 0x2000, scoped, tag = 'scratch operand']
  #allocation5 [shape = 'f32[16,32]{1,0:T(8,128)}', space=vmem, size = 0x2000, scoped, tag = 'scratch operand']
  #allocation6 [shape = 'f32[8,32]{1,0:T(8,128)}', space=vmem, size = 0x1000, scoped, tag = 'scratch operand']
  #allocation7 [shape = 's32[1]{0}', space=sflag, size = 0x4, scoped, tag = 'scoped memory for tpu_custom_call.1']
  #allocation8 [shape = 'u8[512]{0}', space=smem, size = 0x200, scoped, tag = 'prefetched SMEM operand 0']
  #allocation9 [shape = 'u8[512]{0}', space=smem, size = 0x200, scoped, tag = 'prefetched SMEM operand 1']
  %s0 = inlined_call_operand.vmem [shape: s32[32], index: 0, kind: input, shape index: {}]
  %s1 = inlined_call_operand.vmem [shape: s32[32], index: 1, kind: input, shape index: {}]
  %s2 = inlined_call_operand.vmem [shape: bf16[16,4], index: 2, kind: input, shape index: {}]
  %s3 = inlined_call_operand.vmem [shape: f32[32,1], index: 3, kind: input, shape index: {}]
  %s4 = inlined_call_operand.vmem [shape: bf16[4,128], index: 4, kind: input, shape index: {}]
  %s5 = inlined_call_operand.vmem [shape: f32[1,128], index: 5, kind: input, shape index: {}]
  %s6 = inlined_call_operand.vmem [shape: f32[1,32], index: 6, kind: input, shape index: {}]
  %s7 = inlined_call_operand.vmem [shape: f32[1,32], index: 7, kind: input, shape index: {}]
  %s8 = inlined_call_operand.hbm [shape: bf16[16,32], index: 8, kind: output, shape index: {}]
  %s9 = sld [smem:[#allocation0]]
  $region97: #{tpu_custom_call.1} parent=0
    _
  %s11 = ssub.s32 1, %s9
  %s12 = scalar_select 0, %s11, %s9
  %s14 = sshll.u32 %s0, 4
  %s15 = int_to_ptr.vmem [resolvable:$true] %s14
  %17 = dma.vmem_to_smem %s15, 16, [#allocation8], [#allocation7]
  %s19 = sshll.u32 %s1, 4
  %s20 = int_to_ptr.vmem [resolvable:$true] %s19
  %22 = dma.vmem_to_smem %s20, 16, [#allocation9], [#allocation7]
  %24 = dma.done [#allocation7], 32
  %25 = sfence
  $region1: #{tpu_custom_call.1} parent=0
    #allocation10 [shape = 'u8[4096]{0}', space=vmem, size = 0x1000, scoped, tag = 'output window, operand 0, single buffered']
    #allocation11 [shape = 's32[2]{0}', space=sflag, size = 0x8, scoped, tag = 'scoped memory for tpu_custom_call.1']
    %26 = vsyncpa [#allocation11], 0
    loop: start=0, step=1, limit=6
    $region2: #{tpu_custom_call.1} parent=1 // loop_pre_header
      _
    $region3: #{tpu_custom_call.1} parent=1 // loop_header
      %s28 = sphi 0, %s32
      %p29 = scmp.ge.s32.totalorder %s28, 6
      %s36 = sphi 0, %s36
      %s38 = sphi 0, %s36
      %s39 = sphi 0, %s38
      %s53 = sphi 0, %s39
      %s59 = sphi 0, %s61
      %s62 = sphi 0, %s59
      %s63 = sphi 0, %s62
      %s79 = sphi 0, %s63
      %s83 = sphi 0, %s83
      %s85 = sphi 0, %s83
      %s86 = sphi 0, %s85
      %s100 = sphi 0, %s86
      %s104 = sphi 0, %s104
      %s106 = sphi 0, %s104
      %s107 = sphi 0, %s106
      %s121 = sphi 0, %s107
      %s125 = sphi 0, %s125
      %s127 = sphi 0, %s125
      %s128 = sphi 0, %s127
      %s142 = sphi 0, %s128
      %s146 = sphi 0, %s146
      %s148 = sphi 0, %s146
      %s149 = sphi 0, %s148
      %s163 = sphi 0, %s149
      %s167 = sphi 0, %s167
      %s169 = sphi 0, %s167
      %s170 = sphi 0, %s169
      %s184 = sphi 0, %s170
    $region4: #{tpu_custom_call.1} parent=1 // loop_header_branch
      %31 = sbr.rel (%p29) target = $region8
    $region5: #{tpu_custom_call.1} parent=1 // loop_body
      %s33 = ssub.s32 %s28, 1
      %s34 = ssub.s32 %s28, 2
      %s35 = sadd.s32 %s28, 1
      %s37 = sadd.s32 %s36, 1
      %p40 = scmp.eq.s32.totalorder %s28, 3
      %p41 = scmp.ne.s32.totalorder %s36, %s38
      %p42 = scmp.eq.s32.totalorder %s28, 0
      %p43 = por %p41, %p42
      %p44 = scmp.ne.s32.totalorder %s36, %s38
      %p45 = scmp.eq.s32.totalorder %s33, 3
      %p46 = por %p44, %p45
      %p47 = scmp.ne.s32.totalorder %s38, %s39
      %p48 = scmp.eq.s32.totalorder %s33, 0
      %p49 = por %p47, %p48
      %p50 = scmp.ne.s32.totalorder %s38, %s39
      %p51 = scmp.eq.s32.totalorder %s34, 3
      %p52 = por %p50, %p51
      %p54 = scmp.ne.s32.totalorder %s39, %s53
      %p55 = scmp.eq.s32.totalorder %s34, 0
      %p56 = por %p54, %p55
      %s57 = ssub.s32 %s28, %s35
      %p58 = scmp.eq.s32.totalorder %s57, 0
      %s60 = sadd.s32 %s59, 1
      %s61 = scalar_select %p58, %s59, %s60
      %p64 = pneg %p58
      %p65 = scmp.eq.s32.totalorder %s28, 3
      %p66 = por %p64, %p65
      %p67 = scmp.ne.s32.totalorder %s59, %s62
      %p68 = scmp.eq.s32.totalorder %s28, 0
      %p69 = por %p67, %p68
      %p70 = scmp.ne.s32.totalorder %s59, %s62
      %p71 = scmp.eq.s32.totalorder %s33, 3
      %p72 = por %p70, %p71
      %p73 = scmp.ne.s32.totalorder %s62, %s63
      %p74 = scmp.eq.s32.totalorder %s33, 0
      %p75 = por %p73, %p74
      %p76 = scmp.ne.s32.totalorder %s62, %s63
      %p77 = scmp.eq.s32.totalorder %s34, 3
      %p78 = por %p76, %p77
      %p80 = scmp.ne.s32.totalorder %s63, %s79
      %p81 = scmp.eq.s32.totalorder %s34, 0
      %p82 = por %p80, %p81
      %s84 = sadd.s32 %s83, 1
      %p87 = scmp.eq.s32.totalorder %s28, 3
      %p88 = scmp.ne.s32.totalorder %s83, %s85
      %p89 = scmp.eq.s32.totalorder %s28, 0
      %p90 = por %p88, %p89
      %p91 = scmp.ne.s32.totalorder %s83, %s85
      %p92 = scmp.eq.s32.totalorder %s33, 3
      %p93 = por %p91, %p92
      %p94 = scmp.ne.s32.totalorder %s85, %s86
      %p95 = scmp.eq.s32.totalorder %s33, 0
      %p96 = por %p94, %p95
      %p97 = scmp.ne.s32.totalorder %s85, %s86
      %p98 = scmp.eq.s32.totalorder %s34, 3
      %p99 = por %p97, %p98
      %p101 = scmp.ne.s32.totalorder %s86, %s100
      %p102 = scmp.eq.s32.totalorder %s34, 0
      %p103 = por %p101, %p102
      %s105 = sadd.s32 %s104, 1
      %p108 = scmp.eq.s32.totalorder %s28, 3
      %p109 = scmp.ne.s32.totalorder %s104, %s106
      %p110 = scmp.eq.s32.totalorder %s28, 0
      %p111 = por %p109, %p110
      %p112 = scmp.ne.s32.totalorder %s104, %s106
      %p113 = scmp.eq.s32.totalorder %s33, 3
      %p114 = por %p112, %p113
      %p115 = scmp.ne.s32.totalorder %s106, %s107
      %p116 = scmp.eq.s32.totalorder %s33, 0
      %p117 = por %p115, %p116
      %p118 = scmp.ne.s32.totalorder %s106, %s107
      %p119 = scmp.eq.s32.totalorder %s34, 3
      %p120 = por %p118, %p119
      %p122 = scmp.ne.s32.totalorder %s107, %s121
      %p123 = scmp.eq.s32.totalorder %s34, 0
      %p124 = por %p122, %p123
      %s126 = sadd.s32 %s125, 1
      %p129 = scmp.eq.s32.totalorder %s28, 3
      %p130 = scmp.ne.s32.totalorder %s125, %s127
      %p131 = scmp.eq.s32.totalorder %s28, 0
      %p132 = por %p130, %p131
      %p133 = scmp.ne.s32.totalorder %s125, %s127
      %p134 = scmp.eq.s32.totalorder %s33, 3
      %p135 = por %p133, %p134
      %p136 = scmp.ne.s32.totalorder %s127, %s128
      %p137 = scmp.eq.s32.totalorder %s33, 0
      %p138 = por %p136, %p137
      %p139 = scmp.ne.s32.totalorder %s127, %s128
      %p140 = scmp.eq.s32.totalorder %s34, 3
      %p141 = por %p139, %p140
      %p143 = scmp.ne.s32.totalorder %s128, %s142
      %p144 = scmp.eq.s32.totalorder %s34, 0
      %p145 = por %p143, %p144
      %s147 = sadd.s32 %s146, 1
      %p150 = scmp.eq.s32.totalorder %s28, 3
      %p151 = scmp.ne.s32.totalorder %s146, %s148
      %p152 = scmp.eq.s32.totalorder %s28, 0
      %p153 = por %p151, %p152
      %p154 = scmp.ne.s32.totalorder %s146, %s148
      %p155 = scmp.eq.s32.totalorder %s33, 3
      %p156 = por %p154, %p155
      %p157 = scmp.ne.s32.totalorder %s148, %s149
      %p158 = scmp.eq.s32.totalorder %s33, 0
      %p159 = por %p157, %p158
      %p160 = scmp.ne.s32.totalorder %s148, %s149
      %p161 = scmp.eq.s32.totalorder %s34, 3
      %p162 = por %p160, %p161
      %p164 = scmp.ne.s32.totalorder %s149, %s163
      %p165 = scmp.eq.s32.totalorder %s34, 0
      %p166 = por %p164, %p165
      %s168 = sadd.s32 %s167, 1
      %p171 = scmp.eq.s32.totalorder %s28, 3
      %p172 = scmp.ne.s32.totalorder %s167, %s169
      %p173 = scmp.eq.s32.totalorder %s28, 0
      %p174 = por %p172, %p173
      %p175 = scmp.ne.s32.totalorder %s167, %s169
      %p176 = scmp.eq.s32.totalorder %s33, 3
      %p177 = por %p175, %p176
      %p178 = scmp.ne.s32.totalorder %s169, %s170
      %p179 = scmp.eq.s32.totalorder %s33, 0
      %p180 = por %p178, %p179
      %p181 = scmp.ne.s32.totalorder %s169, %s170
      %p182 = scmp.eq.s32.totalorder %s34, 3
      %p183 = por %p181, %p182
      %p185 = scmp.ne.s32.totalorder %s170, %s184
      %p186 = scmp.eq.s32.totalorder %s34, 0
      %p187 = por %p185, %p186
      %p188 = scmp.le.s32.totalorder 1, %s28
      %p189 = scmp.lt.s32.totalorder %s28, 5
      %p190 = pnand %p188, %p189
      %p191 = pneg %p190
      // Predicated region
      $region9: #{tpu_custom_call.1} parent=5 // pred_check
        _
      $region10: #{tpu_custom_call.1} parent=5 // pred_check_branch
        %193 = sbr.rel (%p190) target = $region12
      $region11: #{tpu_custom_call.1} parent=5 // pred_region
        %s194 = ssub.s32 %s28, 1
        // Predicated region
        $region13: #{tpu_custom_call.1} parent=11 // pred_check
          %p195 = pneg %p49
        $region14: #{tpu_custom_call.1} parent=11 // pred_check_branch
          %197 = sbr.rel (%p195) target = $region16
        $region15: #{tpu_custom_call.1} parent=11 // pred_region
          _
        $region16: #{tpu_custom_call.1} parent=11 // pred_fallthru
          _
        // Predicated region
        $region17: #{tpu_custom_call.1} parent=11 // pred_check
          %p198 = pneg %p96
        $region18: #{tpu_custom_call.1} parent=11 // pred_check_branch
          %200 = sbr.rel (%p198) target = $region20
        $region19: #{tpu_custom_call.1} parent=11 // pred_region
          _
        $region20: #{tpu_custom_call.1} parent=11 // pred_fallthru
          _
        // Predicated region
        $region21: #{tpu_custom_call.1} parent=11 // pred_check
          %p201 = pneg %p117
        $region22: #{tpu_custom_call.1} parent=11 // pred_check_branch
          %203 = sbr.rel (%p201) target = $region24
        $region23: #{tpu_custom_call.1} parent=11 // pred_region
          _
        $region24: #{tpu_custom_call.1} parent=11 // pred_fallthru
          _
        // Predicated region
        $region25: #{tpu_custom_call.1} parent=11 // pred_check
          %p204 = pneg %p138
        $region26: #{tpu_custom_call.1} parent=11 // pred_check_branch
          %206 = sbr.rel (%p204) target = $region28
        $region27: #{tpu_custom_call.1} parent=11 // pred_region
          _
        $region28: #{tpu_custom_call.1} parent=11 // pred_fallthru
          _
        // Predicated region
        $region29: #{tpu_custom_call.1} parent=11 // pred_check
          %p207 = pneg %p159
        $region30: #{tpu_custom_call.1} parent=11 // pred_check_branch
          %209 = sbr.rel (%p207) target = $region32
        $region31: #{tpu_custom_call.1} parent=11 // pred_region
          _
        $region32: #{tpu_custom_call.1} parent=11 // pred_fallthru
          _
      $region12: #{tpu_custom_call.1} parent=5 // pred_fallthru
        _
      %p210 = scmp.lt.s32.totalorder %s28, 4
      // Predicated region
      $region33: #{tpu_custom_call.1} parent=5 // pred_check
        %p211 = pneg %p210
      $region34: #{tpu_custom_call.1} parent=5 // pred_check_branch
        %213 = sbr.rel (%p211) target = $region36
      $region35: #{tpu_custom_call.1} parent=5 // pred_region
        // Predicated region
        $region37: #{tpu_custom_call.1} parent=35 // pred_check
          %p214 = pneg %p69
        $region38: #{tpu_custom_call.1} parent=35 // pred_check_branch
          %216 = sbr.rel (%p214) target = $region40
        $region39: #{tpu_custom_call.1} parent=35 // pred_region
          %p217 = scmp.lt.s32.totalorder %s28, 3
          %s218 = scalar_select %p217, %s28, 3
          %s219 = smul.addr %s218, 8
          %s220 = scalar_lea.vmem %s3, %s219
        $region40: #{tpu_custom_call.1} parent=35 // pred_fallthru
          _
      $region36: #{tpu_custom_call.1} parent=5 // pred_fallthru
        _
      %p221 = scmp.le.s32.totalorder 1, %s28
      %p222 = scmp.lt.s32.totalorder %s28, 5
      %p223 = pnand %p221, %p222
      %p224 = pneg %p223
      // Predicated region
      $region41: #{tpu_custom_call.1} parent=5 // pred_check
        _
      $region42: #{tpu_custom_call.1} parent=5 // pred_check_branch
        %226 = sbr.rel (%p223) target = $region44
      $region43: #{tpu_custom_call.1} parent=5 // pred_region
        %s227 = ssub.s32 %s28, 1
        %p228 = pneg %p49
        %p229 = pneg %p46
        %p230 = scmp.lt.s32.totalorder %s33, 3
        %s231 = scalar_select %p230, %s33, 3
        %s232 = smul.addr %s231, 8
        %s233 = scalar_lea.vmem %s3, %s232
        %p234 = pneg %p75
        %p235 = pneg %p72
        %p236 = pneg %p96
        %p237 = pneg %p93
        %p238 = pneg %p117
        %p239 = pneg %p114
        %p240 = pneg %p138
        %p241 = pneg %p135
        %p242 = pneg %p159
        %p243 = pneg %p156
        %p244 = pneg %p180
        %p245 = pneg %p177
        %p246 = scmp.lt.s32.totalorder %s33, 3
        %s247 = scalar_select %p246, %s33, 3
        %s248 = smul.addr %s247, 8
        %s249 = scalar_lea.vmem %s3, %s248
        %p251 = scmp.eq.s32.totalorder %s33, 0
        // Predicated region
        $region45: #{tpu_custom_call.1} parent=43 // pred_check
          %p252 = pneg %p251
        $region46: #{tpu_custom_call.1} parent=43 // pred_check_branch
          %254 = sbr.rel (%p252) target = $region48
        $region47: #{tpu_custom_call.1} parent=43 // pred_region
          %v255 = vld [vmem:[%s2] sm:$0xf]
          %v256 = vld [vmem:[%s2 + $0x4] sm:$0xf]
          %v257 = vld [vmem:[%s4] sm:$0x3]
          %v258 = vld [vmem:[%s5] sm:$0x1]
          %v260 = vperm.slane %v258, 0
          %v264 = vunpack.c.l.b16 %v255
          %v265 = vunpack.c.l.b16 %v256
          %v266 = vpack.c.b16 %v265, %v264
          %vm267 = vcmask 31744
          %v269 = vsel %vm267, %v266, 0
          %vm271 = vcmask 1041408
          %v273 = vsel %vm271, %v257, 0
          %275 = vmatpush.bf16.msra.mxu0 0
          %276 = vmatpush.bf16.msra.mxu0 0
          %277 = vmatpush.bf16.msra.mxu0 0
          %278 = vmatpush.bf16.msra.mxu0 0
          %279 = vmatpush.bf16.msra.mxu0 0
          %280 = vmatpush.bf16.msra.mxu0 0
          %281 = vmatpush.bf16.msra.mxu0 0
          %282 = vmatpush.bf16.msra.mxu0 %v273
          %283 = vmatmul.bf16.gmra.mxu0 %v269
          %v284 = vpop.f32.mrf.mxu0
          %v285 = vadd.f32 %v260, %v284
          %v286 = vpop.f32.mrf.mxu0
          %v287 = vadd.f32 %v260, %v286
          %288 = vdwg.mxu0
          %vm289 = vcmask 261120
          %290 = vst.msk [vmem:[#allocation2] sm:$0xff] %vm289, %v285
          %291 = vst.msk [vmem:[#allocation2 + $0x8] sm:$0xff] %vm289, %v287
          %294 = vrot.lane.b32.xlu0 %v285, 96
          %v295 = vpop.permute.xlu0 %294
          %296 = vrot.lane.b32.xlu0 %v287, 96
          %v297 = vpop.permute.xlu0 %296
          %300 = vst.msk [vmem:[#allocation3] sm:$0xff] %vm289, %v295
          %301 = vst.msk [vmem:[#allocation3 + $0x8] sm:$0xff] %vm289, %v297
          %302 = vrot.lane.b32.xlu0 %v285, 64
          %v303 = vpop.permute.xlu0 %302
          %304 = vrot.lane.b32.xlu0 %v287, 64
          %v305 = vpop.permute.xlu0 %304
          %308 = vst.msk [vmem:[#allocation4] sm:$0xff] %vm289, %v303
          %309 = vst.msk [vmem:[#allocation4 + $0x8] sm:$0xff] %vm289, %v305
          %310 = vrot.lane.b32.xlu0 %v285, 32
          %v311 = vpop.permute.xlu0 %310
          %312 = vrot.lane.b32.xlu0 %v287, 32
          %v313 = vpop.permute.xlu0 %312
          %316 = vst.msk [vmem:[#allocation5] sm:$0xff] %vm289, %v311
          %317 = vst.msk [vmem:[#allocation5 + $0x8] sm:$0xff] %vm289, %v313
        $region48: #{tpu_custom_call.1} parent=43 // pred_fallthru
          _
        %v318 = vld [vmem:[%s249] sm:$0xff]
        %v319 = vld [vmem:[%s6] sm:$0x1]
        %321 = vset.pattern.permute.xlu0 0
        %322 = vperm.xlu0 %321, %v318
        %v323 = vpop.permute.xlu0 %322
        %v326 = vperm.slane %v319, 0
        %v328 = vmul.f32 %v323, %v326
        %v329 = vld [vmem:[%s7] sm:$0x1]
        %v331 = vperm.slane %v329, 0
        %v333 = vadd.f32 %v328, %v331
        %vm334 = vcmask 261120
        %335 = vst.msk [vmem:[#allocation6] sm:$0xff] %vm334, %v333
        %s336 = smul.u32 %s33, 8
        %s337 = sld [smem:[#allocation8 + %s336]]
        %s338 = sld [smem:[#allocation9 + %s336]]
        %v339 = vld [vmem:[#allocation6] sm:$0x1]
        %s340 = scalar_lea.vmem [#allocation2], %s338
        %v341 = vld [vmem:[%s340] sm:$0x1]
        %v342 = vadd.f32 %v341, %v339
        %s343 = scalar_lea.vmem [#allocation3], %s337
        %v344 = vld [vmem:[%s343] sm:$0x1]
        %v345 = vadd.f32 %v344, %v339
        %s346 = scalar_lea.vmem [#allocation4], %s337
        %v347 = vld [vmem:[%s346] sm:$0x1]
        %v348 = vadd.f32 %v347, %v339
        %v349 = vadd.f32 %v342, %v345
        %v350 = vxor.u32 %v349, 2147483648
        %v351 = vmul.f32 %v350, 1.442695
        %v352 = vpow.pop %v351
        %v353 = vadd.f32 %v352, 1.0
        %v354 = vrcp.pop %v353
        %v355 = vmul.f32 %v353, %v354
        %v356 = vsub.f32 1.0, %v355
        %v357 = vmul.f32 %v354, %v356
        %v358 = vadd.f32 %v354, %v357
        %vm359 = vweird.f32 %v353
        %vm360 = vweird.f32 %v354
        %vm361 = vmor %vm359, %vm360
        %v362 = vsel %vm361, %v354, %v358
        %v363 = vand.u32 2147483647, %v353
        %vm364 = vcmp.eq.f32.partialorder %v363, 8.507059e+37
        %v365 = vand.u32 %v353, 2147483648
        %v366 = vor.u32 1.1754944e-38, %v365
        %v367 = vsel %vm364, %v366, %v362
        %v368 = vmul.f32 1.0, %v367
        %v369 = vmul.f32 %v368, %v348
        %p370 = scmp.lt.s32.totalorder %s336, 32
        // Predicated region
        $region49: #{tpu_custom_call.1} parent=43 // pred_check
          %p371 = pneg %p370
        $region50: #{tpu_custom_call.1} parent=43 // pred_check_branch
          %373 = sbr.rel (%p371) target = $region52
        $region51: #{tpu_custom_call.1} parent=43 // pred_region
          %s374 = scalar_lea.vmem [#allocation5], %s338
          %v375 = vld [vmem:[%s374] sm:$0x1]
          %v376 = vadd.f32 %v375, %v369
          %vm377 = vcmask 253952
          %378 = vst.msk [vmem:[%s374] sm:$0x1] %vm377, %v376
        $region52: #{tpu_custom_call.1} parent=43 // pred_fallthru
          _
        %s379 = sadd.s32 %s336, 1
        %s380 = sld [smem:[#allocation8 + %s379]]
        %s381 = sld [smem:[#allocation9 + %s379]]
        %v382 = vld [vmem:[#allocation6 + $0x1] sm:$0x1]
        %s383 = scalar_lea.vmem [#allocation2], %s381
        %v384 = vld [vmem:[%s383] sm:$0x1]
        %v385 = vadd.f32 %v384, %v382
        %s386 = scalar_lea.vmem [#allocation3], %s380
        %v387 = vld [vmem:[%s386] sm:$0x1]
        %v388 = vadd.f32 %v387, %v382
        %s389 = scalar_lea.vmem [#allocation4], %s380
        %v390 = vld [vmem:[%s389] sm:$0x1]
        %v391 = vadd.f32 %v390, %v382
        %v392 = vadd.f32 %v385, %v388
        %v393 = vxor.u32 %v392, 2147483648
        %v394 = vmul.f32 %v393, 1.442695
        %v395 = vpow.pop %v394
        %v396 = vadd.f32 %v395, 1.0
        %v397 = vrcp.pop %v396
        %v398 = vmul.f32 %v396, %v397
        %v399 = vsub.f32 1.0, %v398
        %v400 = vmul.f32 %v397, %v399
        %v401 = vadd.f32 %v397, %v400
        %vm402 = vweird.f32 %v396
        %vm403 = vweird.f32 %v397
        %vm404 = vmor %vm402, %vm403
        %v405 = vsel %vm404, %v397, %v401
        %v406 = vand.u32 2147483647, %v396
        %vm407 = vcmp.eq.f32.partialorder %v406, 8.507059e+37
        %v408 = vand.u32 %v396, 2147483648
        %v409 = vor.u32 1.1754944e-38, %v408
        %v410 = vsel %vm407, %v409, %v405
        %v411 = vmul.f32 1.0, %v410
        %v412 = vmul.f32 %v411, %v391
        %p413 = scmp.lt.s32.totalorder %s379, 32
        // Predicated region
        $region53: #{tpu_custom_call.1} parent=43 // pred_check
          %p414 = pneg %p413
        $region54: #{tpu_custom_call.1} parent=43 // pred_check_branch
          %416 = sbr.rel (%p414) target = $region56
        $region55: #{tpu_custom_call.1} parent=43 // pred_region
          %s417 = scalar_lea.vmem [#allocation5], %s381
          %v418 = vld [vmem:[%s417] sm:$0x1]
          %v419 = vadd.f32 %v418, %v412
          %vm420 = vcmask 253952
          %421 = vst.msk [vmem:[%s417] sm:$0x1] %vm420, %v419
        $region56: #{tpu_custom_call.1} parent=43 // pred_fallthru
          _
        %s422 = sadd.s32 %s336, 2
        %s423 = sld [smem:[#allocation8 + %s422]]
        %s424 = sld [smem:[#allocation9 + %s422]]
        %v425 = vld [vmem:[#allocation6 + $0x2] sm:$0x1]
        %s426 = scalar_lea.vmem [#allocation2], %s424
        %v427 = vld [vmem:[%s426] sm:$0x1]
        %v428 = vadd.f32 %v427, %v425
        %s429 = scalar_lea.vmem [#allocation3], %s423
        %v430 = vld [vmem:[%s429] sm:$0x1]
        %v431 = vadd.f32 %v430, %v425
        %s432 = scalar_lea.vmem [#allocation4], %s423
        %v433 = vld [vmem:[%s432] sm:$0x1]
        %v434 = vadd.f32 %v433, %v425
        %v435 = vadd.f32 %v428, %v431
        %v436 = vxor.u32 %v435, 2147483648
        %v437 = vmul.f32 %v436, 1.442695
        %v438 = vpow.pop %v437
        %v439 = vadd.f32 %v438, 1.0
        %v440 = vrcp.pop %v439
        %v441 = vmul.f32 %v439, %v440
        %v442 = vsub.f32 1.0, %v441
        %v443 = vmul.f32 %v440, %v442
        %v444 = vadd.f32 %v440, %v443
        %vm445 = vweird.f32 %v439
        %vm446 = vweird.f32 %v440
        %vm447 = vmor %vm445, %vm446
        %v448 = vsel %vm447, %v440, %v444
        %v449 = vand.u32 2147483647, %v439
        %vm450 = vcmp.eq.f32.partialorder %v449, 8.507059e+37
        %v451 = vand.u32 %v439, 2147483648
        %v452 = vor.u32 1.1754944e-38, %v451
        %v453 = vsel %vm450, %v452, %v448
        %v454 = vmul.f32 1.0, %v453
        %v455 = vmul.f32 %v454, %v434
        %p456 = scmp.lt.s32.totalorder %s422, 32
        // Predicated region
        $region57: #{tpu_custom_call.1} parent=43 // pred_check
          %p457 = pneg %p456
        $region58: #{tpu_custom_call.1} parent=43 // pred_check_branch
          %459 = sbr.rel (%p457) target = $region60
        $region59: #{tpu_custom_call.1} parent=43 // pred_region
          %s460 = scalar_lea.vmem [#allocation5], %s424
          %v461 = vld [vmem:[%s460] sm:$0x1]
          %v462 = vadd.f32 %v461, %v455
          %vm463 = vcmask 253952
          %464 = vst.msk [vmem:[%s460] sm:$0x1] %vm463, %v462
        $region60: #{tpu_custom_call.1} parent=43 // pred_fallthru
          _
        %s465 = sadd.s32 %s336, 3
        %s466 = sld [smem:[#allocation8 + %s465]]
        %s467 = sld [smem:[#allocation9 + %s465]]
        %v468 = vld [vmem:[#allocation6 + $0x3] sm:$0x1]
        %s469 = scalar_lea.vmem [#allocation2], %s467
        %v470 = vld [vmem:[%s469] sm:$0x1]
        %v471 = vadd.f32 %v470, %v468
        %s472 = scalar_lea.vmem [#allocation3], %s466
        %v473 = vld [vmem:[%s472] sm:$0x1]
        %v474 = vadd.f32 %v473, %v468
        %s475 = scalar_lea.vmem [#allocation4], %s466
        %v476 = vld [vmem:[%s475] sm:$0x1]
        %v477 = vadd.f32 %v476, %v468
        %v478 = vadd.f32 %v471, %v474
        %v479 = vxor.u32 %v478, 2147483648
        %v480 = vmul.f32 %v479, 1.442695
        %v481 = vpow.pop %v480
        %v482 = vadd.f32 %v481, 1.0
        %v483 = vrcp.pop %v482
        %v484 = vmul.f32 %v482, %v483
        %v485 = vsub.f32 1.0, %v484
        %v486 = vmul.f32 %v483, %v485
        %v487 = vadd.f32 %v483, %v486
        %vm488 = vweird.f32 %v482
        %vm489 = vweird.f32 %v483
        %vm490 = vmor %vm488, %vm489
        %v491 = vsel %vm490, %v483, %v487
        %v492 = vand.u32 2147483647, %v482
        %vm493 = vcmp.eq.f32.partialorder %v492, 8.507059e+37
        %v494 = vand.u32 %v482, 2147483648
        %v495 = vor.u32 1.1754944e-38, %v494
        %v496 = vsel %vm493, %v495, %v491
        %v497 = vmul.f32 1.0, %v496
        %v498 = vmul.f32 %v497, %v477
        %p499 = scmp.lt.s32.totalorder %s465, 32
        // Predicated region
        $region61: #{tpu_custom_call.1} parent=43 // pred_check
          %p500 = pneg %p499
        $region62: #{tpu_custom_call.1} parent=43 // pred_check_branch
          %502 = sbr.rel (%p500) target = $region64
        $region63: #{tpu_custom_call.1} parent=43 // pred_region
          %s503 = scalar_lea.vmem [#allocation5], %s467
          %v504 = vld [vmem:[%s503] sm:$0x1]
          %v505 = vadd.f32 %v504, %v498
          %vm506 = vcmask 253952
          %507 = vst.msk [vmem:[%s503] sm:$0x1] %vm506, %v505
        $region64: #{tpu_custom_call.1} parent=43 // pred_fallthru
          _
        %s508 = sadd.s32 %s336, 4
        %s509 = sld [smem:[#allocation8 + %s508]]
        %s510 = sld [smem:[#allocation9 + %s508]]
        %v511 = vld [vmem:[#allocation6 + $0x4] sm:$0x1]
        %s512 = scalar_lea.vmem [#allocation2], %s510
        %v513 = vld [vmem:[%s512] sm:$0x1]
        %v514 = vadd.f32 %v513, %v511
        %s515 = scalar_lea.vmem [#allocation3], %s509
        %v516 = vld [vmem:[%s515] sm:$0x1]
        %v517 = vadd.f32 %v516, %v511
        %s518 = scalar_lea.vmem [#allocation4], %s509
        %v519 = vld [vmem:[%s518] sm:$0x1]
        %v520 = vadd.f32 %v519, %v511
        %v521 = vadd.f32 %v514, %v517
        %v522 = vxor.u32 %v521, 2147483648
        %v523 = vmul.f32 %v522, 1.442695
        %v524 = vpow.pop %v523
        %v525 = vadd.f32 %v524, 1.0
        %v526 = vrcp.pop %v525
        %v527 = vmul.f32 %v525, %v526
        %v528 = vsub.f32 1.0, %v527
        %v529 = vmul.f32 %v526, %v528
        %v530 = vadd.f32 %v526, %v529
        %vm531 = vweird.f32 %v525
        %vm532 = vweird.f32 %v526
        %vm533 = vmor %vm531, %vm532
        %v534 = vsel %vm533, %v526, %v530
        %v535 = vand.u32 2147483647, %v525
        %vm536 = vcmp.eq.f32.partialorder %v535, 8.507059e+37
        %v537 = vand.u32 %v525, 2147483648
        %v538 = vor.u32 1.1754944e-38, %v537
        %v539 = vsel %vm536, %v538, %v534
        %v540 = vmul.f32 1.0, %v539
        %v541 = vmul.f32 %v540, %v520
        %p542 = scmp.lt.s32.totalorder %s508, 32
        // Predicated region
        $region65: #{tpu_custom_call.1} parent=43 // pred_check
          %p543 = pneg %p542
        $region66: #{tpu_custom_call.1} parent=43 // pred_check_branch
          %545 = sbr.rel (%p543) target = $region68
        $region67: #{tpu_custom_call.1} parent=43 // pred_region
          %s546 = scalar_lea.vmem [#allocation5], %s510
          %v547 = vld [vmem:[%s546] sm:$0x1]
          %v548 = vadd.f32 %v547, %v541
          %vm549 = vcmask 253952
          %550 = vst.msk [vmem:[%s546] sm:$0x1] %vm549, %v548
        $region68: #{tpu_custom_call.1} parent=43 // pred_fallthru
          _
        %s551 = sadd.s32 %s336, 5
        %s552 = sld [smem:[#allocation8 + %s551]]
        %s553 = sld [smem:[#allocation9 + %s551]]
        %v554 = vld [vmem:[#allocation6 + $0x5] sm:$0x1]
        %s555 = scalar_lea.vmem [#allocation2], %s553
        %v556 = vld [vmem:[%s555] sm:$0x1]
        %v557 = vadd.f32 %v556, %v554
        %s558 = scalar_lea.vmem [#allocation3], %s552
        %v559 = vld [vmem:[%s558] sm:$0x1]
        %v560 = vadd.f32 %v559, %v554
        %s561 = scalar_lea.vmem [#allocation4], %s552
        %v562 = vld [vmem:[%s561] sm:$0x1]
        %v563 = vadd.f32 %v562, %v554
        %v564 = vadd.f32 %v557, %v560
        %v565 = vxor.u32 %v564, 2147483648
        %v566 = vmul.f32 %v565, 1.442695
        %v567 = vpow.pop %v566
        %v568 = vadd.f32 %v567, 1.0
        %v569 = vrcp.pop %v568
        %v570 = vmul.f32 %v568, %v569
        %v571 = vsub.f32 1.0, %v570
        %v572 = vmul.f32 %v569, %v571
        %v573 = vadd.f32 %v569, %v572
        %vm574 = vweird.f32 %v568
        %vm575 = vweird.f32 %v569
        %vm576 = vmor %vm574, %vm575
        %v577 = vsel %vm576, %v569, %v573
        %v578 = vand.u32 2147483647, %v568
        %vm579 = vcmp.eq.f32.partialorder %v578, 8.507059e+37
        %v580 = vand.u32 %v568, 2147483648
        %v581 = vor.u32 1.1754944e-38, %v580
        %v582 = vsel %vm579, %v581, %v577
        %v583 = vmul.f32 1.0, %v582
        %v584 = vmul.f32 %v583, %v563
        %p585 = scmp.lt.s32.totalorder %s551, 32
        // Predicated region
        $region69: #{tpu_custom_call.1} parent=43 // pred_check
          %p586 = pneg %p585
        $region70: #{tpu_custom_call.1} parent=43 // pred_check_branch
          %588 = sbr.rel (%p586) target = $region72
        $region71: #{tpu_custom_call.1} parent=43 // pred_region
          %s589 = scalar_lea.vmem [#allocation5], %s553
          %v590 = vld [vmem:[%s589] sm:$0x1]
          %v591 = vadd.f32 %v590, %v584
          %vm592 = vcmask 253952
          %593 = vst.msk [vmem:[%s589] sm:$0x1] %vm592, %v591
        $region72: #{tpu_custom_call.1} parent=43 // pred_fallthru
          _
        %s594 = sadd.s32 %s336, 6
        %s595 = sld [smem:[#allocation8 + %s594]]
        %s596 = sld [smem:[#allocation9 + %s594]]
        %v597 = vld [vmem:[#allocation6 + $0x6] sm:$0x1]
        %s598 = scalar_lea.vmem [#allocation2], %s596
        %v599 = vld [vmem:[%s598] sm:$0x1]
        %v600 = vadd.f32 %v599, %v597
        %s601 = scalar_lea.vmem [#allocation3], %s595
        %v602 = vld [vmem:[%s601] sm:$0x1]
        %v603 = vadd.f32 %v602, %v597
        %s604 = scalar_lea.vmem [#allocation4], %s595
        %v605 = vld [vmem:[%s604] sm:$0x1]
        %v606 = vadd.f32 %v605, %v597
        %v607 = vadd.f32 %v600, %v603
        %v608 = vxor.u32 %v607, 2147483648
        %v609 = vmul.f32 %v608, 1.442695
        %v610 = vpow.pop %v609
        %v611 = vadd.f32 %v610, 1.0
        %v612 = vrcp.pop %v611
        %v613 = vmul.f32 %v611, %v612
        %v614 = vsub.f32 1.0, %v613
        %v615 = vmul.f32 %v612, %v614
        %v616 = vadd.f32 %v612, %v615
        %vm617 = vweird.f32 %v611
        %vm618 = vweird.f32 %v612
        %vm619 = vmor %vm617, %vm618
        %v620 = vsel %vm619, %v612, %v616
        %v621 = vand.u32 2147483647, %v611
        %vm622 = vcmp.eq.f32.partialorder %v621, 8.507059e+37
        %v623 = vand.u32 %v611, 2147483648
        %v624 = vor.u32 1.1754944e-38, %v623
        %v625 = vsel %vm622, %v624, %v620
        %v626 = vmul.f32 1.0, %v625
        %v627 = vmul.f32 %v626, %v606
        %p628 = scmp.lt.s32.totalorder %s594, 32
        // Predicated region
        $region73: #{tpu_custom_call.1} parent=43 // pred_check
          %p629 = pneg %p628
        $region74: #{tpu_custom_call.1} parent=43 // pred_check_branch
          %631 = sbr.rel (%p629) target = $region76
        $region75: #{tpu_custom_call.1} parent=43 // pred_region
          %s632 = scalar_lea.vmem [#allocation5], %s596
          %v633 = vld [vmem:[%s632] sm:$0x1]
          %v634 = vadd.f32 %v633, %v627
          %vm635 = vcmask 253952
          %636 = vst.msk [vmem:[%s632] sm:$0x1] %vm635, %v634
        $region76: #{tpu_custom_call.1} parent=43 // pred_fallthru
          _
        %s637 = sadd.s32 %s336, 7
        %s638 = sld [smem:[#allocation8 + %s637]]
        %s639 = sld [smem:[#allocation9 + %s637]]
        %v640 = vld [vmem:[#allocation6 + $0x7] sm:$0x1]
        %s641 = scalar_lea.vmem [#allocation2], %s639
        %v642 = vld [vmem:[%s641] sm:$0x1]
        %v643 = vadd.f32 %v642, %v640
        %s644 = scalar_lea.vmem [#allocation3], %s638
        %v645 = vld [vmem:[%s644] sm:$0x1]
        %v646 = vadd.f32 %v645, %v640
        %s647 = scalar_lea.vmem [#allocation4], %s638
        %v648 = vld [vmem:[%s647] sm:$0x1]
        %v649 = vadd.f32 %v648, %v640
        %v650 = vadd.f32 %v643, %v646
        %v651 = vxor.u32 %v650, 2147483648
        %v652 = vmul.f32 %v651, 1.442695
        %v653 = vpow.pop %v652
        %v654 = vadd.f32 %v653, 1.0
        %v655 = vrcp.pop %v654
        %v656 = vmul.f32 %v654, %v655
        %v657 = vsub.f32 1.0, %v656
        %v658 = vmul.f32 %v655, %v657
        %v659 = vadd.f32 %v655, %v658
        %vm660 = vweird.f32 %v654
        %vm661 = vweird.f32 %v655
        %vm662 = vmor %vm660, %vm661
        %v663 = vsel %vm662, %v655, %v659
        %v664 = vand.u32 2147483647, %v654
        %vm665 = vcmp.eq.f32.partialorder %v664, 8.507059e+37
        %v666 = vand.u32 %v654, 2147483648
        %v667 = vor.u32 1.1754944e-38, %v666
        %v668 = vsel %vm665, %v667, %v663
        %v669 = vmul.f32 1.0, %v668
        %v670 = vmul.f32 %v669, %v649
        %p671 = scmp.lt.s32.totalorder %s637, 32
        // Predicated region
        $region77: #{tpu_custom_call.1} parent=43 // pred_check
          %p672 = pneg %p671
        $region78: #{tpu_custom_call.1} parent=43 // pred_check_branch
          %674 = sbr.rel (%p672) target = $region80
        $region79: #{tpu_custom_call.1} parent=43 // pred_region
          %s675 = scalar_lea.vmem [#allocation5], %s639
          %v676 = vld [vmem:[%s675] sm:$0x1]
          %v677 = vadd.f32 %v676, %v670
          %vm678 = vcmask 253952
          %679 = vst.msk [vmem:[%s675] sm:$0x1] %vm678, %v677
        $region80: #{tpu_custom_call.1} parent=43 // pred_fallthru
          _
        %p680 = scmp.eq.s32.totalorder %s33, 3
        // Predicated region
        $region81: #{tpu_custom_call.1} parent=43 // pred_check
          %p681 = pneg %p680
        $region82: #{tpu_custom_call.1} parent=43 // pred_check_branch
          %683 = sbr.rel (%p681) target = $region84
        $region83: #{tpu_custom_call.1} parent=43 // pred_region
          %v684 = vld [vmem:[#allocation5] sm:$0xff]
          %v685 = vld [vmem:[#allocation5 + $0x8] sm:$0xff]
          %vm686 = vcmp.gt.f32.partialorder %v684, 0.0
          %vm687 = vcmp.gt.f32.partialorder %v685, 0.0
          %v688 = vmul.f32 %v684, 0.01
          %v689 = vmul.f32 %v685, 0.01
          %v690 = vsel %vm686, %v684, %v688
          %v691 = vsel %vm687, %v685, %v689
          %v692 = vpack.c.bf16 %v690, %v690
          %v693 = vpack.c.bf16 %v691, %v691
          %vm694 = vcmask 257024
          %695 = vst.msk [vmem:[#allocation10] sm:$0xf] %vm694, %v692
          %696 = vst.msk [vmem:[#allocation10 + $0x4] sm:$0xf] %vm694, %v693
        $region84: #{tpu_custom_call.1} parent=43 // pred_fallthru
          _
        // Predicated region
        $region85: #{tpu_custom_call.1} parent=43 // pred_check
          %p697 = pneg %p177
        $region86: #{tpu_custom_call.1} parent=43 // pred_check_branch
          %699 = sbr.rel (%p697) target = $region88
        $region87: #{tpu_custom_call.1} parent=43 // pred_region
          %701 = vsyncadd [#allocation11], 0
          %s702 = sshll.u32 [#allocation10], 4
          %s703 = int_to_ptr.vmem [resolvable:$true] %s702
          %s704 = sshll.u32 %s8, 4
          %s705 = int_to_ptr.hbm [resolvable:$true] %s704
          %710 = dma.vmem_to_hbm [thread:$0]  %s703, 128, %s705, [#allocation11], 64, 64, 4
        $region88: #{tpu_custom_call.1} parent=43 // pred_fallthru
          _
        // Predicated region
        $region89: #{tpu_custom_call.1} parent=43 // pred_check
          %p711 = pneg %p177
        $region90: #{tpu_custom_call.1} parent=43 // pred_check_branch
          %713 = sbr.rel (%p711) target = $region92
        $region91: #{tpu_custom_call.1} parent=43 // pred_region
          %715 = dma.done [#allocation11], 128
        $region92: #{tpu_custom_call.1} parent=43 // pred_fallthru
          _
      $region44: #{tpu_custom_call.1} parent=5 // pred_fallthru
        _
      %p716 = scmp.le.s32.totalorder 2, %s28
      // Predicated region
      $region93: #{tpu_custom_call.1} parent=5 // pred_check
        %p717 = pneg %p716
      $region94: #{tpu_custom_call.1} parent=5 // pred_check_branch
        %719 = sbr.rel (%p717) target = $region96
      $region95: #{tpu_custom_call.1} parent=5 // pred_region
        %s720 = ssub.s32 %s28, 2
      $region96: #{tpu_custom_call.1} parent=5 // pred_fallthru
        _
    $region6: #{tpu_custom_call.1} parent=1 // loop_footer
      %s32 = sadd.s32 1, %s28
    $region7: #{tpu_custom_call.1} parent=1 // loop_footer_branch
      %27 = sbr.rel target = $region3
    $region8: #{tpu_custom_call.1} parent=1 // loop_exit
      _
    %721 = vsyncpa [#allocation11], 1
    %s722 = scalar_lea.sflag [#allocation11], 1
    %723 = vsyncpa %s722, 1

</llo_original>
